<compile_context>
chip_gen: v7x
topology: tpu7x:2x2x1
jax: 0.10.0
libtpu: 0.0.40
codegen_flags: <defaults>
</compile_context>

<pallas_src>
import jax
import jax.numpy as jnp
from jax.experimental import pallas as pl
from jax.experimental.pallas import tpu as pltpu


def _round_up(x: int, m: int) -> int:
    return ((x + m - 1) // m) * m


def _sublane(dtype) -> int:
    # Sub-32-bit dtypes pack along sublanes: 8 rows for f32, 16 for bf16, 32 for 1B.
    return max(8, 32 // jnp.dtype(dtype).itemsize)


def _vmem_limit(requested: int) -> int:
    # Derive the cap from the actual chip (v7x only has 64 MiB/TC) and leave
    # headroom for compiler-internal scratch / double buffers.
    try:
        cap = int(pltpu.get_tpu_info().vmem_capacity_bytes)
    except Exception:
        cap = 64 << 20
    hard_cap = min(cap // 2, 48 << 20)
    return int(min(max(int(requested * 1.5), 16 << 20), hard_cap))


def _xc_kernel(x_ref, ct_ref, h_ref, acc_ref):
    """Pass 1: H = x @ (C.T * sig).  grid = (batch tiles i, in tiles k); k reduces."""
    k = pl.program_id(1)

    @pl.when(k == 0)
    def _():
        acc_ref[...] = jnp.zeros_like(acc_ref)

    acc_ref[...] += jnp.dot(x_ref[...], ct_ref[...],
                            preferred_element_type=jnp.float32)

    @pl.when(k == pl.num_programs(1) - 1)
    def _():
        h_ref[...] = acc_ref[...].astype(h_ref.dtype)


def _hn_kernel(h_ref, nt_ref, bias_ref, o_ref, acc_ref):
    """Pass 2: out = H @ N.T + bias.  grid = (batch i, out j, rank kr); kr reduces."""
    kr = pl.program_id(2)

    @pl.when(kr == 0)
    def _():
        acc_ref[...] = jnp.zeros_like(acc_ref)

    acc_ref[...] += jnp.dot(h_ref[...], nt_ref[...],
                            preferred_element_type=jnp.float32)

    @pl.when(kr == pl.num_programs(2) - 1)
    def _():
        o_ref[...] = (acc_ref[...] + bias_ref[...]).astype(o_ref.dtype)


def prepare_svd_linear_params(N, C, Sigma, bias=None, *,
                              weight_correction_scale=2.0 ** 0.5,
                              allow_svd_values_negative=False,
                              weight_dtype=jnp.bfloat16,
                              tn=512, tk=1024, tr=512):
    """One-time parameter prep (cache the result; the per-call wrapper only pads x).

    N: (out_dim, r)   C: (r, in_dim)   Sigma: (r,)   bias: (out_dim,) or None.
    """
    # TODO(synk): an fp8 weight path for v7x (per-channel scales folded like Sigma)
    # would halve weight HBM bytes again; not implemented here.
    out_dim, r = N.shape
    r2, in_dim = C.shape
    assert r2 == r and Sigma.shape == (r,)
    if bias is None:
        bias = jnp.zeros((out_dim,), dtype=jnp.float32)
    weight_dtype = jnp.dtype(weight_dtype)

    # Fold |Sigma| * weight_correction_scale into C.T once (per-row scale of C).
    sig = Sigma if allow_svd_values_negative else jnp.abs(Sigma)
    sig = sig.astype(jnp.float32) * jnp.float32(weight_correction_scale)
    ct = C.astype(jnp.float32).T * sig[None, :]                       # (in_dim, r)

    # Cap tile sizes at the 128-aligned problem dims, then pad to exact multiples
    # so every grid step is a full, lane-dense, unmasked tile.
    tk = min(tk, _round_up(in_dim, 128))
    tn = min(tn, _round_up(out_dim, 128))
    tr = min(tr, _round_up(r, 128))
    in_pad = _round_up(in_dim, tk)
    out_pad = _round_up(out_dim, tn)
    r_pad = _round_up(r, tr)

    # Zero-pad (padding contributes exact zeros), then cast to the streaming dtype.
    ct_p = jnp.pad(ct, ((0, in_pad - in_dim), (0, r_pad - r))).astype(weight_dtype)
    nt_p = jnp.pad(N.astype(jnp.float32).T,
                   ((0, r_pad - r), (0, out_pad - out_dim))).astype(weight_dtype)
    bias_p = jnp.pad(bias.astype(jnp.float32),
                     (0, out_pad - out_dim)).reshape(1, out_pad)

    return dict(ct=ct_p, nt=nt_p, bias=bias_p,
                in_dim=in_dim, out_dim=out_dim, r=r,
                in_pad=in_pad, out_pad=out_pad, r_pad=r_pad,
                tk=tk, tn=tn, tr=tr, weight_dtype=weight_dtype)


def svd_linear_forward(x, params, *, activation=None, tm=256):
    """Forward pass of SVD_Linear.  x: (B, in_dim) -> (B, out_dim)."""
    # TODO(synk): non-default activations (sigmoid/tanh/relu/...) are not implemented.
    assert activation in (None, "linear"), "only the default linear activation is supported"

    B, in_dim = x.shape
    assert in_dim == params["in_dim"]
    out_dim = params["out_dim"]
    in_pad, out_pad, r_pad = params["in_pad"], params["out_pad"], params["r_pad"]
    tk, tn, tr = params["tk"], params["tn"], params["tr"]
    ct_p, nt_p, bias_p = params["ct"], params["nt"], params["bias"]
    wdt = params["weight_dtype"]
    out_dtype = x.dtype

    # Batch tiling: round to the sublane packing of the compute dtype, and when the
    # batch allows it keep >= 2 parallel blocks so both v7x TensorCores get work.
    sub = _sublane(wdt)
    tm = min(tm, _round_up(B, sub))
    b_pad = _round_up(B, tm)
    if b_pad // tm < 2 and b_pad >= 2 * sub:
        tm = _round_up(b_pad // 2, sub)
        b_pad = _round_up(B, tm)

    # Only x needs per-call padding (weights are cached pre-padded).
    x_p = jnp.pad(x.astype(wdt), ((0, b_pad - B), (0, in_pad - in_dim)))

    w_isz = wdt.itemsize
    o_isz = jnp.dtype(out_dtype).itemsize

    # ---------------- pass 1: H = x @ (C.T * sig) --------------------------------
    nb, nk = b_pad // tm, in_pad // tk
    vmem1 = (2 * (tm * tk * w_isz + tk * r_pad * w_isz + tm * r_pad * w_isz)
             + tm * r_pad * 4)
    cost1 = pl.CostEstimate(
        flops=2 * b_pad * in_pad * r_pad,
        transcendentals=0,
        bytes_accessed=int(x_p.size * w_isz + ct_p.size * w_isz
                           + b_pad * r_pad * w_isz))
    h = pl.pallas_call(
        _xc_kernel,
        out_shape=jax.ShapeDtypeStruct((b_pad, r_pad), wdt),
        grid_spec=pltpu.PrefetchScalarGridSpec(
            num_scalar_prefetch=0,
            grid=(nb, nk),
            in_specs=[
                pl.BlockSpec((tm, tk), lambda i, k: (i, k)),        # x tile
                pl.BlockSpec((tk, r_pad), lambda i, k: (k, 0)),     # (C.T * sig) tile
            ],
            out_specs=pl.BlockSpec((tm, r_pad), lambda i, k: (i, 0)),
            scratch_shapes=[pltpu.VMEM((tm, r_pad), jnp.float32)],
        ),
        compiler_params=pltpu.CompilerParams(
            dimension_semantics=("parallel", "arbitrary"),
            vmem_limit_bytes=_vmem_limit(vmem1),
        ),
        cost_estimate=cost1,
    )(x_p, ct_p)

    # ---------------- pass 2: out = H @ N.T + bias -------------------------------
    nout, nr = out_pad // tn, r_pad // tr
    vmem2 = (2 * (tm * tr * w_isz + tr * tn * w_isz + 8 * tn * 4 + tm * tn * o_isz)
             + tm * tn * 4)
    cost2 = pl.CostEstimate(
        flops=2 * b_pad * r_pad * out_pad,
        transcendentals=0,
        bytes_accessed=int(b_pad * r_pad * w_isz + nt_p.size * w_isz
                           + bias_p.size * 4 + b_pad * out_pad * o_isz))
    out_padded = pl.pallas_call(
        _hn_kernel,
        out_shape=jax.ShapeDtypeStruct((b_pad, out_pad), out_dtype),
        grid_spec=pltpu.PrefetchScalarGridSpec(
            num_scalar_prefetch=0,
            grid=(nb, nout, nr),
            in_specs=[
                pl.BlockSpec((tm, tr), lambda i, j, kr: (i, kr)),    # H tile
                pl.BlockSpec((tr, tn), lambda i, j, kr: (kr, j)),    # N.T tile
                pl.BlockSpec((1, tn), lambda i, j, kr: (0, j)),      # bias row
            ],
            out_specs=pl.BlockSpec((tm, tn), lambda i, j, kr: (i, j)),
            scratch_shapes=[pltpu.VMEM((tm, tn), jnp.float32)],
        ),
        compiler_params=pltpu.CompilerParams(
            dimension_semantics=("parallel", "parallel", "arbitrary"),
            vmem_limit_bytes=_vmem_limit(vmem2),
        ),
        cost_estimate=cost2,
    )(h, nt_p, bias_p)

    return out_padded[:B, :out_dim]


def _orthogonal(key, rows, cols):
    """Deterministic orthogonal init (mimics nn.init.orthogonal_): QR of a Gaussian."""
    a = jax.random.normal(key, (rows, cols), dtype=jnp.float32)
    if rows < cols:
        q, rmat = jnp.linalg.qr(a.T)
        q = q * jnp.sign(jnp.diag(rmat))[None, :]
        return q.T[:rows, :cols]
    q, rmat = jnp.linalg.qr(a)
    q = q * jnp.sign(jnp.diag(rmat))[None, :]
    return q[:rows, :cols]


if __name__ == "__main__":
    # Small shapes consistent with the module: a plain 2-D linear layer input.
    batch, in_dim, out_dim = 8, 32, 16
    r = min(in_dim, out_dim)
    bias_init = 0.0
    weight_correction_scale = 2.0 ** 0.5

    key = jax.random.PRNGKey(0)
    k_x, k_n, k_c, k_s = jax.random.split(key, 4)

    x = jax.random.normal(k_x, (batch, in_dim), dtype=jnp.float32)
    N = _orthogonal(k_n, out_dim, r)                       # N.T @ N = I_r
    C = _orthogonal(k_c, r, in_dim)                        # C @ C.T = I_r
    Sigma = 1.0 + 0.1 * jax.random.normal(k_s, (r,), dtype=jnp.float32)
    bias = jnp.full((out_dim,), bias_init, dtype=jnp.float32)

    # Pure-JAX reference of the exact PyTorch forward.
    W = N @ (jnp.diag(jnp.abs(Sigma)) @ C)
    ref = x @ (W * weight_correction_scale).T + bias[None, :]

    # Strict-precision path (f32 weight streaming) -- tight check vs reference.
    params_f32 = prepare_svd_linear_params(
        N, C, Sigma, bias,
        weight_correction_scale=weight_correction_scale,
        allow_svd_values_negative=False,
        weight_dtype=jnp.float32)
    out_f32 = jax.block_until_ready(svd_linear_forward(x, params_f32))
    assert out_f32.shape == (batch, out_dim)
    assert jnp.allclose(out_f32, ref, atol=1e-4, rtol=1e-4), "f32 path mismatch"

    # Fast path (default): bf16 weight/activation streaming, f32 accumulation.
    params_bf16 = prepare_svd_linear_params(
        N, C, Sigma, bias,
        weight_correction_scale=weight_correction_scale,
        allow_svd_values_negative=False,
        weight_dtype=jnp.bfloat16)
    out_bf16 = jax.block_until_ready(svd_linear_forward(x, params_bf16))
    assert out_bf16.shape == (batch, out_dim)
    assert jnp.allclose(out_bf16.astype(jnp.float32), ref, atol=1e-1, rtol=5e-2), \
        "bf16 path mismatch"

    print("KERNEL_OK")
</pallas_src>

<mosaic_0001>
module attributes {stable_mosaic.version = 11 : i64} {
  func.func @_xc_kernel(%arg0: i32, %arg1: i32, %arg2: memref<8x128xf32, #tpu.memory_space<vmem>>, %arg3: memref<128x128xf32, #tpu.memory_space<vmem>>, %arg4: memref<8x128xf32, #tpu.memory_space<vmem>>, %arg5: memref<8x128xf32, #tpu.memory_space<vmem>>) attributes {dimension_semantics = [#tpu.dimension_semantics<parallel>, #tpu.dimension_semantics<arbitrary>], iteration_bounds = array<i64: 1, 1>, scalar_prefetch = 0 : i64, scratch_operands = 1 : i64, tpu.core_type = #tpu.core_type<tc>, window_params = [{transform_indices = @transform_0, window_bounds = array<i64: 8, 128>}, {transform_indices = @transform_1, window_bounds = array<i64: 128, 128>}, {transform_indices = @transform_2, window_bounds = array<i64: 8, 128>}]} {
    %c0_i32 = arith.constant 0 : i32
    %0 = arith.cmpi eq, %arg1, %c0_i32 : i32
    %1 = arith.extui %0 : i1 to i32
    %c0_i32_0 = arith.constant 0 : i32
    %2 = arith.cmpi ne, %1, %c0_i32_0 : i32
    scf.if %2 {
      %cst_10 = arith.constant 0.000000e+00 : f32
      %12 = vector.broadcast %cst_10 : f32 to vector<8x128xf32>
      %c0_11 = arith.constant 0 : index
      %c0_12 = arith.constant 0 : index
      %13 = vector.load %arg5[%c0_11, %c0_12] : memref<8x128xf32, #tpu.memory_space<vmem>>, vector<8x128xf32>
      tpu.vector_store %arg5[%c0_11, %c0_12], %12 {strides = array<i32>} : memref<8x128xf32, #tpu.memory_space<vmem>>, vector<8x128xf32>,
    } else {
    }
    %c0 = arith.constant 0 : index
    %c0_1 = arith.constant 0 : index
    %3 = vector.load %arg5[%c0, %c0_1] : memref<8x128xf32, #tpu.memory_space<vmem>>, vector<8x128xf32>
    %c0_2 = arith.constant 0 : index
    %c0_3 = arith.constant 0 : index
    %4 = vector.load %arg2[%c0_2, %c0_3] : memref<8x128xf32, #tpu.memory_space<vmem>>, vector<8x128xf32>
    %c0_4 = arith.constant 0 : index
    %c0_5 = arith.constant 0 : index
    %5 = vector.load %arg3[%c0_4, %c0_5] : memref<128x128xf32, #tpu.memory_space<vmem>>, vector<128x128xf32>
    %cst = arith.constant dense<0.000000e+00> : vector<8x128xf32>
    %6 = tpu.matmul %4, %5, %cst {dimension_numbers = #tpu.dot_dimension_numbers<[1], [0], [0], [1], [0, 0, 1, 1], [], []>} : vector<8x128xf32>, vector<128x128xf32>, vector<8x128xf32> -> vector<8x128xf32>
    %7 = arith.addf %3, %6 : vector<8x128xf32>
    %c0_6 = arith.constant 0 : index
    %c0_7 = arith.constant 0 : index
    %8 = vector.load %arg5[%c0_6, %c0_7] : memref<8x128xf32, #tpu.memory_space<vmem>>, vector<8x128xf32>
    tpu.vector_store %arg5[%c0_6, %c0_7], %7 {strides = array<i32>} : memref<8x128xf32, #tpu.memory_space<vmem>>, vector<8x128xf32>,
    %c0_i32_8 = arith.constant 0 : i32
    %9 = arith.cmpi eq, %arg1, %c0_i32_8 : i32
    %10 = arith.extui %9 : i1 to i32
    %c0_i32_9 = arith.constant 0 : i32
    %11 = arith.cmpi ne, %10, %c0_i32_9 : i32
    scf.if %11 {
      %c0_10 = arith.constant 0 : index
      %c0_11 = arith.constant 0 : index
      %12 = vector.load %arg5[%c0_10, %c0_11] : memref<8x128xf32, #tpu.memory_space<vmem>>, vector<8x128xf32>
      %c0_12 = arith.constant 0 : index
      %c0_13 = arith.constant 0 : index
      %13 = vector.load %arg4[%c0_12, %c0_13] : memref<8x128xf32, #tpu.memory_space<vmem>>, vector<8x128xf32>
      tpu.vector_store %arg4[%c0_12, %c0_13], %12 {strides = array<i32>} : memref<8x128xf32, #tpu.memory_space<vmem>>, vector<8x128xf32>,
    } else {
    }
    return
  }
  func.func @transform_0(%arg0: i32, %arg1: i32) -> (i32, i32) {
    %c0_i32 = arith.constant 0 : i32
    return %arg0, %arg1 : i32, i32
  }
  func.func @transform_1(%arg0: i32, %arg1: i32) -> (i32, i32) {
    %c0_i32 = arith.constant 0 : i32
    %c0_i32_0 = arith.constant 0 : i32
    return %arg1, %c0_i32 : i32, i32
  }
  func.func @transform_2(%arg0: i32, %arg1: i32) -> (i32, i32) {
    %c0_i32 = arith.constant 0 : i32
    %c0_i32_0 = arith.constant 0 : i32
    return %arg0, %c0_i32 : i32, i32
  }
}

</mosaic_0001>

<llo_original>
// kernel: tpu_custom_call.1
$region0: #{tpu_custom_call.1}
  #allocation0 [shape = 'u32[]', space=smem, size = 0x4, offset = 0x4, fixed_abs, tag = 'smem constant byte address 0x4 - core index']
  #allocation1 [shape = 'u32[144,128]{1,0:T(1,128)}', space=vmem, size = 0x12000, scoped, tag = 'internal scratch']
  #allocation2 [shape = 'f32[8,128]{1,0:T(8,128)}', space=vmem, size = 0x1000, scoped, tag = 'scratch operand']
  %s0 = inlined_call_operand.hbm [shape: f32[8,128], index: 0, kind: input, shape index: {}]
  %s1 = inlined_call_operand.hbm [shape: f32[128,128], index: 1, kind: input, shape index: {}]
  %s2 = inlined_call_operand.hbm [shape: f32[8,128], index: 2, kind: output, shape index: {}]
  %s3 = sld [smem:[#allocation0]]
  $region34: #{tpu_custom_call.1} parent=0
    _
  %s5 = ssub.s32 1, %s3
  %s6 = scalar_select 0, %s5, %s3
  $region1: #{tpu_custom_call.1} parent=0
    #allocation3 [shape = 'u8[4096]{0}', space=vmem, size = 0x1000, scoped, tag = 'input window, operand 0, single buffered']
    #allocation4 [shape = 's32[1]{0}', space=sflag, size = 0x4, scoped, tag = 'scoped memory for tpu_custom_call.1']
    #allocation5 [shape = 's32[1]{0}', space=sflag, size = 0x4, scoped, tag = 'scoped memory for tpu_custom_call.1']
    #allocation6 [shape = 'u8[65536]{0}', space=vmem, size = 0x10000, scoped, tag = 'input window, operand 1, single buffered']
    #allocation7 [shape = 's32[1]{0}', space=sflag, size = 0x4, scoped, tag = 'scoped memory for tpu_custom_call.1']
    #allocation8 [shape = 'u8[4096]{0}', space=vmem, size = 0x1000, scoped, tag = 'output window, operand 0, single buffered']
    %7 = vsyncpa [#allocation4], 0
    %8 = vsyncpa [#allocation7], 0
    %9 = vsyncpa [#allocation5], 0
    // Predicated region
    $region2: #{tpu_custom_call.1} parent=1 // pred_check
      _
    $region3: #{tpu_custom_call.1} parent=1 // pred_check_branch
      %11 = sbr.rel (0) target = $region5
    $region4: #{tpu_custom_call.1} parent=1 // pred_region
      %s13 = ssub.s32 128, 128
      %14 = vsyncadd [#allocation4], %s13
      %s16 = sshll.u32 [#allocation3], 4
      %s17 = int_to_ptr.vmem [resolvable:$true] %s16
      %19 = dma.hbm_to_vmem [thread:$0]  %s0, 128, %s17, [#allocation4]
    $region5: #{tpu_custom_call.1} parent=1 // pred_fallthru
      _
    // Predicated region
    $region6: #{tpu_custom_call.1} parent=1 // pred_check
      _
    $region7: #{tpu_custom_call.1} parent=1 // pred_check_branch
      %21 = sbr.rel (0) target = $region9
    $region8: #{tpu_custom_call.1} parent=1 // pred_region
      %s23 = ssub.s32 2048, 2048
      %24 = vsyncadd [#allocation7], %s23
      %s25 = sshll.u32 [#allocation6], 4
      %s26 = int_to_ptr.vmem [resolvable:$true] %s25
      %31 = dma.hbm_to_vmem [thread:$0]  %s1, 2048, %s26, [#allocation7], 128, 128, 8
    $region9: #{tpu_custom_call.1} parent=1 // pred_fallthru
      _
    // Predicated region
    $region10: #{tpu_custom_call.1} parent=1 // pred_check
      _
    $region11: #{tpu_custom_call.1} parent=1 // pred_check_branch
      %33 = sbr.rel (0) target = $region13
    $region12: #{tpu_custom_call.1} parent=1 // pred_region
      %34 = dma.done [#allocation4], 128
    $region13: #{tpu_custom_call.1} parent=1 // pred_fallthru
      _
    // Predicated region
    $region14: #{tpu_custom_call.1} parent=1 // pred_check
      _
    $region15: #{tpu_custom_call.1} parent=1 // pred_check_branch
      %36 = sbr.rel (0) target = $region17
    $region16: #{tpu_custom_call.1} parent=1 // pred_region
      %37 = dma.done [#allocation7], 2048
    $region17: #{tpu_custom_call.1} parent=1 // pred_fallthru
      _
    %p38 = scmp.eq.s32.totalorder 0, 0
    // Predicated region
    $region18: #{tpu_custom_call.1} parent=1 // pred_check
      %p39 = pneg %p38
    $region19: #{tpu_custom_call.1} parent=1 // pred_check_branch
      %41 = sbr.rel (%p39) target = $region21
    $region20: #{tpu_custom_call.1} parent=1 // pred_region
      %42 = vst [vmem:[#allocation2] sm:$0xff] 0.0
    $region21: #{tpu_custom_call.1} parent=1 // pred_fallthru
      _
    %v43 = vld [vmem:[#allocation2] sm:$0xff]
    %v44 = vld [vmem:[#allocation3] sm:$0xff]
    %v45 = vld [vmem:[#allocation6] sm:$0xff]
    %v46 = vld [vmem:[#allocation6 + $0x8] sm:$0xff]
    %v47 = vld [vmem:[#allocation6 + $0x10] sm:$0xff]
    %v48 = vld [vmem:[#allocation6 + $0x18] sm:$0xff]
    %v49 = vld [vmem:[#allocation6 + $0x20] sm:$0xff]
    %v50 = vld [vmem:[#allocation6 + $0x28] sm:$0xff]
    %v51 = vld [vmem:[#allocation6 + $0x30] sm:$0xff]
    %v52 = vld [vmem:[#allocation6 + $0x38] sm:$0xff]
    %v53 = vld [vmem:[#allocation6 + $0x40] sm:$0xff]
    %v54 = vld [vmem:[#allocation6 + $0x48] sm:$0xff]
    %v55 = vld [vmem:[#allocation6 + $0x50] sm:$0xff]
    %v56 = vld [vmem:[#allocation6 + $0x58] sm:$0xff]
    %v57 = vld [vmem:[#allocation6 + $0x60] sm:$0xff]
    %v58 = vld [vmem:[#allocation6 + $0x68] sm:$0xff]
    %v59 = vld [vmem:[#allocation6 + $0x70] sm:$0xff]
    %v60 = vld [vmem:[#allocation6 + $0x78] sm:$0xff]
    %61 = vmatprep.subr.mxu0 0.0
    %62 = vmatpush1.msra.mxu0 %v45
    %63 = vmatprep.subr.mxu0 0.0
    %64 = vmatpush1.msra.mxu0 %v46
    %65 = vmatprep.subr.mxu0 0.0
    %66 = vmatpush1.msra.mxu0 %v47
    %67 = vmatprep.subr.mxu0 0.0
    %68 = vmatpush1.msra.mxu0 %v48
    %69 = vmatprep.subr.mxu0 0.0
    %70 = vmatpush1.msra.mxu0 %v49
    %71 = vmatprep.subr.mxu0 0.0
    %72 = vmatpush1.msra.mxu0 %v50
    %73 = vmatprep.subr.mxu0 0.0
    %74 = vmatpush1.msra.mxu0 %v51
    %75 = vmatprep.subr.mxu0 0.0
    %76 = vmatpush1.msra.mxu0 %v52
    %77 = vmatprep.subr.mxu0 0.0
    %78 = vmatpush1.msra.mxu0 %v53
    %79 = vmatprep.subr.mxu0 0.0
    %80 = vmatpush1.msra.mxu0 %v54
    %81 = vmatprep.subr.mxu0 0.0
    %82 = vmatpush1.msra.mxu0 %v55
    %83 = vmatprep.subr.mxu0 0.0
    %84 = vmatpush1.msra.mxu0 %v56
    %85 = vmatprep.subr.mxu0 0.0
    %86 = vmatpush1.msra.mxu0 %v57
    %87 = vmatprep.subr.mxu0 0.0
    %88 = vmatpush1.msra.mxu0 %v58
    %89 = vmatprep.subr.mxu0 0.0
    %90 = vmatpush1.msra.mxu0 %v59
    %91 = vmatprep.subr.mxu0 0.0
    %92 = vmatpush1.msra.mxu0 %v60
    %93 = vmatprep.subr.mxu0 0.0
    %94 = vmatpush1.msra.mxu0 0.0
    %95 = vmatprep.subr.mxu0 0.0
    %96 = vmatpush1.msra.mxu0 0.0
    %97 = vmatprep.subr.mxu0 0.0
    %98 = vmatpush1.msra.mxu0 0.0
    %99 = vmatprep.subr.mxu0 0.0
    %100 = vmatpush1.msra.mxu0 0.0
    %101 = vmatprep.subr.mxu0 0.0
    %102 = vmatpush1.msra.mxu0 0.0
    %103 = vmatprep.subr.mxu0 0.0
    %104 = vmatpush1.msra.mxu0 0.0
    %105 = vmatprep.subr.mxu0 0.0
    %106 = vmatpush1.msra.mxu0 0.0
    %107 = vmatprep.subr.mxu0 0.0
    %108 = vmatpush1.msra.mxu0 0.0
    %109 = vmatprep.subr.mxu0 0.0
    %110 = vmatpush1.msra.mxu0 0.0
    %111 = vmatprep.subr.mxu0 0.0
    %112 = vmatpush1.msra.mxu0 0.0
    %113 = vmatprep.subr.mxu0 0.0
    %114 = vmatpush1.msra.mxu0 0.0
    %115 = vmatprep.subr.mxu0 0.0
    %116 = vmatpush1.msra.mxu0 0.0
    %117 = vmatprep.subr.mxu0 0.0
    %118 = vmatpush1.msra.mxu0 0.0
    %119 = vmatprep.subr.mxu0 0.0
    %120 = vmatpush1.msra.mxu0 0.0
    %121 = vmatprep.subr.mxu0 0.0
    %122 = vmatpush1.msra.mxu0 0.0
    %123 = vmatprep.subr.mxu0 0.0
    %124 = vmatpush1.msra.mxu0 0.0
    %125 = vmatprep.mubr.f32.mxu0 0.0
    %126 = vmatmul.mubr.f32.gmra.mrb[0].mxu0 %v44
    %v127 = vpop.f32.mrb[0].mxu0
    %v128 = vadd.f32 0.0, %v127
    %v129 = vpop.f32.mrb[0].mxu0
    %130 = vdwg.mxu0
    %v131 = vadd.f32 %v43, %v128
    %132 = vst [vmem:[#allocation2] sm:$0xff] %v131
    // Predicated region
    $region22: #{tpu_custom_call.1} parent=1 // pred_check
      %p133 = pneg %p38
    $region23: #{tpu_custom_call.1} parent=1 // pred_check_branch
      %135 = sbr.rel (%p133) target = $region25
    $region24: #{tpu_custom_call.1} parent=1 // pred_region
      %v136 = vld [vmem:[#allocation2] sm:$0xff]
      %137 = vst [vmem:[#allocation8] sm:$0xff] %v136
    $region25: #{tpu_custom_call.1} parent=1 // pred_fallthru
      _
    // Predicated region
    $region26: #{tpu_custom_call.1} parent=1 // pred_check
      _
    $region27: #{tpu_custom_call.1} parent=1 // pred_check_branch
      %139 = sbr.rel (0) target = $region29
    $region28: #{tpu_custom_call.1} parent=1 // pred_region
      %s141 = ssub.s32 128, 128
      %142 = vsyncadd [#allocation5], %s141
      %s144 = sshll.u32 [#allocation8], 4
      %s145 = int_to_ptr.vmem [resolvable:$true] %s144
      %147 = dma.vmem_to_hbm [thread:$0]  %s145, 128, %s2, [#allocation5]
    $region29: #{tpu_custom_call.1} parent=1 // pred_fallthru
      _
    // Predicated region
    $region30: #{tpu_custom_call.1} parent=1 // pred_check
      _
    $region31: #{tpu_custom_call.1} parent=1 // pred_check_branch
      %149 = sbr.rel (0) target = $region33
    $region32: #{tpu_custom_call.1} parent=1 // pred_region
      %150 = dma.done [#allocation5], 128
    $region33: #{tpu_custom_call.1} parent=1 // pred_fallthru
      _
    %151 = vsyncpa [#allocation4], 1
    %152 = vsyncpa [#allocation7], 1
    %153 = vsyncpa [#allocation5], 1

</llo_original>
